<compile_context>
chip_gen: v7x
topology: tpu7x:2x2x1
jax: 0.10.0
libtpu: 0.0.40
codegen_flags: <defaults>
</compile_context>

<pallas_src>
import jax
import jax.numpy as jnp
from jax import lax
from jax.experimental import pallas as pl
from jax.experimental.pallas import tpu as pltpu

VOCAB = 64
HIDDEN = 32
SEQ = 8
BATCH = 2

LANES = 128  # lane-dense padding target (hidden dim and vocab dim)


def _round_up(x, m):
    return ((x + m - 1) // m) * m


# ---------------------------------------------------------------------------
# Fused kernel: one-hot gather -> dense+tanh -> masked mean pool -> L2 norm.
# Whole batch in a single grid step.
# ---------------------------------------------------------------------------
def fused_kernel(ids_ref, scale_ref, emb_ref, w_ref, b_ref, out_ref):
    BS = ids_ref.shape[0]                 # B * S
    V_PAD, H_PAD = emb_ref.shape
    B = out_ref.shape[0]
    S = BS // B

    # --- embedding gather as an MXU pass: onehot[bs, v] = (v == ids[bs]) -----
    tok = ids_ref[...]                                              # (BS, 1) i32
    vocab_iota = lax.broadcasted_iota(jnp.int32, (BS, V_PAD), 1)
    onehot = (vocab_iota == tok).astype(jnp.bfloat16)               # (BS, V_PAD)
    # bf16 one-hot @ bf16 table with f32 accumulation -> exactly the bf16
    # embedding rows (one nonzero term per dot product).
    x = jnp.dot(onehot, emb_ref[...],
                preferred_element_type=jnp.float32)                 # (BS, H_PAD)

    # --- synthetic encoder hot path: bf16 MXU matmul, f32 accumulate, tanh ---
    h = jnp.tanh(
        jnp.dot(x.astype(jnp.bfloat16), w_ref[...],
                preferred_element_type=jnp.float32) + b_ref[...]
    )                                                               # (BS, H_PAD) f32

    # --- masked mean pooling: masked_fill(~mask, 0).sum(1) / mask.sum(1) -----
    # scale_ref[bs] = mask[b, s] / count[b]  (count == 0 -> NaN, matching the
    # PyTorch reference's divide-by-zero behavior).
    hm = h * scale_ref[...]                                         # (BS, H_PAD)
    pooled = jnp.sum(hm.reshape(B, S, H_PAD), axis=1)               # (B, H_PAD)

    # --- F.normalize(p=2, dim=1): x / max(||x||, eps) == x*rsqrt(max(||x||^2, eps^2))
    sumsq = jnp.sum(pooled * pooled, axis=1, keepdims=True)         # (B, 1)
    inv_norm = lax.rsqrt(jnp.maximum(sumsq, 1e-24))                 # eps = 1e-12
    out_ref[...] = pooled * inv_norm


# ---------------------------------------------------------------------------
# One-time parameter preparation (hoisted out of the per-call path).
# ---------------------------------------------------------------------------
def prepare_params(params, lanes=LANES):
    V, H = params["embedding"].shape
    V_PAD = _round_up(V, lanes)
    H_PAD = _round_up(H, lanes)
    # Zero padding: padded vocab rows are never selected; padded hidden
    # columns stay 0 through dense (zero W rows/cols, zero bias) so pooling
    # and the norm are unaffected.
    emb_pad = (jnp.zeros((V_PAD, H_PAD), jnp.float32)
               .at[:V, :H].set(params["embedding"])
               .astype(jnp.bfloat16))
    w_pad = (jnp.zeros((H_PAD, H_PAD), jnp.float32)
             .at[:H, :H].set(params["w"])
             .astype(jnp.bfloat16))
    b_pad = jnp.zeros((1, H_PAD), jnp.float32).at[:, :H].set(params["b"])
    return {"emb": emb_pad, "w": w_pad, "b": b_pad, "hidden": H}


# ---------------------------------------------------------------------------
# Forward wrapper: tiny data-dependent columns + one pallas_call.
# ---------------------------------------------------------------------------
def triplet_embedding_forward(input_ids, attention_mask, padded):
    B, S = input_ids.shape
    emb_pad, w_pad, b_pad = padded["emb"], padded["w"], padded["b"]
    V_PAD, H_PAD = emb_pad.shape
    BS = B * S

    ids_col = input_ids.reshape(BS, 1).astype(jnp.int32)            # (BS, 1)
    mask_f = attention_mask.astype(jnp.float32)                     # (B, S)
    inv_count = 1.0 / mask_f.sum(axis=1, keepdims=True)             # (B, 1)
    scale = (mask_f * inv_count).reshape(BS, 1)                     # (BS, 1)

    out = pl.pallas_call(
        fused_kernel,
        out_shape=jax.ShapeDtypeStruct((B, H_PAD), jnp.float32),
        grid_spec=pltpu.PrefetchScalarGridSpec(
            num_scalar_prefetch=0,
            grid=(1,),                                              # single step
            in_specs=[
                pl.BlockSpec((BS, 1), lambda i: (0, 0)),            # token ids
                pl.BlockSpec((BS, 1), lambda i: (0, 0)),            # mask/len scale
                pl.BlockSpec((V_PAD, H_PAD), lambda i: (0, 0)),     # emb table (bf16)
                pl.BlockSpec((H_PAD, H_PAD), lambda i: (0, 0)),     # W (bf16)
                pl.BlockSpec((1, H_PAD), lambda i: (0, 0)),         # bias (f32)
            ],
            out_specs=pl.BlockSpec((B, H_PAD), lambda i: (0, 0)),
        ),
        compiler_params=pltpu.CompilerParams(
            dimension_semantics=("arbitrary",)),
    )(ids_col, scale, emb_pad, w_pad, b_pad)

    return out[:, :padded["hidden"]]                                # (B, H)


# ---------------------------------------------------------------------------
# Pure-JAX reference (same synthetic encoder) for correctness checking.
# ---------------------------------------------------------------------------
def reference_forward(input_ids, attention_mask, params):
    emb = jnp.take(params["embedding"], input_ids, axis=0)          # (B, S, H)
    B, S, H = emb.shape
    h = jnp.tanh(
        jnp.dot(emb.reshape(B * S, H).astype(jnp.bfloat16),
                params["w"].astype(jnp.bfloat16),
                preferred_element_type=jnp.float32)
        + params["b"]
    ).reshape(B, S, H)
    m = attention_mask.astype(jnp.float32)
    pooled = (h * m[:, :, None]).sum(axis=1) / m.sum(axis=1, keepdims=True)
    nrm = jnp.maximum(jnp.sqrt((pooled * pooled).sum(axis=1, keepdims=True)), 1e-12)
    return pooled / nrm


if __name__ == "__main__":
    key = jax.random.PRNGKey(0)
    k1, k2, k3 = jax.random.split(key, 3)

    params = {
        "embedding": jax.random.normal(k1, (VOCAB, HIDDEN), jnp.float32) * 0.02,
        "w": jax.random.normal(k2, (HIDDEN, HIDDEN), jnp.float32) * 0.1,
        "b": jnp.zeros((1, HIDDEN), jnp.float32),
    }
    padded = prepare_params(params)          # pad/cast once, not per call

    input_ids = jax.random.randint(k3, (BATCH, SEQ), 0, VOCAB, dtype=jnp.int32)
    # Variable-length sequences -> non-trivial attention mask (1 = real token).
    lens = jnp.array([SEQ, SEQ - 3], dtype=jnp.int32)
    attention_mask = (jnp.arange(SEQ)[None, :] < lens[:, None]).astype(jnp.int32)

    out = triplet_embedding_forward(input_ids, attention_mask, padded)
    out = jax.block_until_ready(out)

    assert out.shape == (BATCH, HIDDEN), out.shape

    ref = reference_forward(input_ids, attention_mask, params)
    assert jnp.allclose(out, ref, atol=1e-4, rtol=1e-4), float(jnp.max(jnp.abs(out - ref)))

    norms = jnp.sqrt(jnp.sum(out * out, axis=1))
    assert jnp.allclose(norms, 1.0, atol=1e-4), norms   # unit-norm embeddings

    print("KERNEL_OK")
</pallas_src>

<mosaic_0001>
module attributes {stable_mosaic.version = 11 : i64} {
  func.func @fused_kernel(%arg0: i32, %arg1: memref<16x1xi32, #tpu.memory_space<vmem>>, %arg2: memref<16x1xf32, #tpu.memory_space<vmem>>, %arg3: memref<128x128xbf16, #tpu.memory_space<vmem>>, %arg4: memref<128x128xbf16, #tpu.memory_space<vmem>>, %arg5: memref<1x128xf32, #tpu.memory_space<vmem>>, %arg6: memref<2x128xf32, #tpu.memory_space<vmem>>) attributes {dimension_semantics = [#tpu.dimension_semantics<arbitrary>], iteration_bounds = array<i64: 1>, scalar_prefetch = 0 : i64, scratch_operands = 0 : i64, tpu.core_type = #tpu.core_type<tc>, window_params = [{pipeline_mode = #tpu.pipeline_mode<synchronous>, transform_indices = @transform_0, window_bounds = array<i64: 16, 1>}, {pipeline_mode = #tpu.pipeline_mode<synchronous>, transform_indices = @transform_1, window_bounds = array<i64: 16, 1>}, {pipeline_mode = #tpu.pipeline_mode<synchronous>, transform_indices = @transform_2, window_bounds = array<i64: 128, 128>}, {pipeline_mode = #tpu.pipeline_mode<synchronous>, transform_indices = @transform_3, window_bounds = array<i64: 128, 128>}, {pipeline_mode = #tpu.pipeline_mode<synchronous>, transform_indices = @transform_4, window_bounds = array<i64: 1, 128>}, {pipeline_mode = #tpu.pipeline_mode<synchronous>, transform_indices = @transform_5, window_bounds = array<i64: 2, 128>}]} {
    %c0 = arith.constant 0 : index
    %c0_0 = arith.constant 0 : index
    %0 = vector.load %arg1[%c0, %c0_0] : memref<16x1xi32, #tpu.memory_space<vmem>>, vector<16x1xi32>
    %1 = tpu.iota {dimensions = array<i32: 1>} : vector<16x128xi32>
    %2 = vector.broadcast %0 : vector<16x1xi32> to vector<16x128xi32>
    %3 = arith.cmpi eq, %1, %2 : vector<16x128xi32>
    %4 = arith.extui %3 : vector<16x128xi1> to vector<16x128xi32>
    %5 = arith.sitofp %4 : vector<16x128xi32> to vector<16x128xf32>
    %6 = arith.truncf %5 : vector<16x128xf32> to vector<16x128xbf16>
    %c0_1 = arith.constant 0 : index
    %c0_2 = arith.constant 0 : index
    %7 = vector.load %arg3[%c0_1, %c0_2] : memref<128x128xbf16, #tpu.memory_space<vmem>>, vector<128x128xbf16>
    %cst = arith.constant dense<0.000000e+00> : vector<16x128xf32>
    %8 = tpu.matmul %6, %7, %cst {dimension_numbers = #tpu.dot_dimension_numbers<[1], [0], [0], [1], [0, 0, 1, 1], [], []>} : vector<16x128xbf16>, vector<128x128xbf16>, vector<16x128xf32> -> vector<16x128xf32>
    %9 = arith.truncf %8 : vector<16x128xf32> to vector<16x128xbf16>
    %c0_3 = arith.constant 0 : index
    %c0_4 = arith.constant 0 : index
    %10 = vector.load %arg4[%c0_3, %c0_4] : memref<128x128xbf16, #tpu.memory_space<vmem>>, vector<128x128xbf16>
    %cst_5 = arith.constant dense<0.000000e+00> : vector<16x128xf32>
    %11 = tpu.matmul %9, %10, %cst_5 {dimension_numbers = #tpu.dot_dimension_numbers<[1], [0], [0], [1], [0, 0, 1, 1], [], []>} : vector<16x128xbf16>, vector<128x128xbf16>, vector<16x128xf32> -> vector<16x128xf32>
    %c0_6 = arith.constant 0 : index
    %c0_7 = arith.constant 0 : index
    %12 = vector.load %arg5[%c0_6, %c0_7] : memref<1x128xf32, #tpu.memory_space<vmem>>, vector<1x128xf32>
    %13 = vector.broadcast %12 : vector<1x128xf32> to vector<16x128xf32>
    %14 = arith.addf %11, %13 : vector<16x128xf32>
    %15 = math.tanh %14 : vector<16x128xf32>
    %c0_8 = arith.constant 0 : index
    %c0_9 = arith.constant 0 : index
    %16 = vector.load %arg2[%c0_8, %c0_9] : memref<16x1xf32, #tpu.memory_space<vmem>>, vector<16x1xf32>
    %17 = vector.broadcast %16 : vector<16x1xf32> to vector<16x128xf32>
    %18 = arith.mulf %15, %17 : vector<16x128xf32>
    %19 = vector.shape_cast %18 : vector<16x128xf32> to vector<2x8x128xf32>
    %cst_10 = arith.constant dense<0.000000e+00> : vector<2x128xf32>
    %20 = vector.multi_reduction <add>, %19, %cst_10 [1] : vector<2x8x128xf32> to vector<2x128xf32>
    %21 = arith.mulf %20, %20 : vector<2x128xf32>
    %cst_11 = arith.constant dense<0.000000e+00> : vector<2xf32>
    %22 = vector.multi_reduction <add>, %21, %cst_11 [1] : vector<2x128xf32> to vector<2xf32>
    %23 = vector.shape_cast %22 : vector<2xf32> to vector<2x1xf32>
    %cst_12 = arith.constant 1.000000e-24 : f32
    %24 = vector.broadcast %cst_12 : f32 to vector<2x1xf32>
    %25 = arith.maximumf %23, %24 : vector<2x1xf32>
    %26 = math.rsqrt %25 : vector<2x1xf32>
    %27 = vector.broadcast %26 : vector<2x1xf32> to vector<2x128xf32>
    %28 = arith.mulf %20, %27 : vector<2x128xf32>
    %c0_13 = arith.constant 0 : index
    %c0_14 = arith.constant 0 : index
    %29 = vector.load %arg6[%c0_13, %c0_14] : memref<2x128xf32, #tpu.memory_space<vmem>>, vector<2x128xf32>
    tpu.vector_store %arg6[%c0_13, %c0_14], %28 {strides = array<i32>} : memref<2x128xf32, #tpu.memory_space<vmem>>, vector<2x128xf32>,
    return
  }
  func.func @transform_0(%arg0: i32) -> (i32, i32) {
    %c0_i32 = arith.constant 0 : i32
    %c0_i32_0 = arith.constant 0 : i32
    %c0_i32_1 = arith.constant 0 : i32
    return %c0_i32, %c0_i32_0 : i32, i32
  }
  func.func @transform_1(%arg0: i32) -> (i32, i32) {
    %c0_i32 = arith.constant 0 : i32
    %c0_i32_0 = arith.constant 0 : i32
    %c0_i32_1 = arith.constant 0 : i32
    return %c0_i32, %c0_i32_0 : i32, i32
  }
  func.func @transform_2(%arg0: i32) -> (i32, i32) {
    %c0_i32 = arith.constant 0 : i32
    %c0_i32_0 = arith.constant 0 : i32
    %c0_i32_1 = arith.constant 0 : i32
    return %c0_i32, %c0_i32_0 : i32, i32
  }
  func.func @transform_3(%arg0: i32) -> (i32, i32) {
    %c0_i32 = arith.constant 0 : i32
    %c0_i32_0 = arith.constant 0 : i32
    %c0_i32_1 = arith.constant 0 : i32
    return %c0_i32, %c0_i32_0 : i32, i32
  }
  func.func @transform_4(%arg0: i32) -> (i32, i32) {
    %c0_i32 = arith.constant 0 : i32
    %c0_i32_0 = arith.constant 0 : i32
    %c0_i32_1 = arith.constant 0 : i32
    return %c0_i32, %c0_i32_0 : i32, i32
  }
  func.func @transform_5(%arg0: i32) -> (i32, i32) {
    %c0_i32 = arith.constant 0 : i32
    %c0_i32_0 = arith.constant 0 : i32
    %c0_i32_1 = arith.constant 0 : i32
    return %c0_i32, %c0_i32_0 : i32, i32
  }
}

</mosaic_0001>

<llo_original>
// kernel: tpu_custom_call.1
$region0: #{tpu_custom_call.1}
  #allocation0 [shape = 'u32[]', space=smem, size = 0x4, offset = 0x4, fixed_abs, tag = 'smem constant byte address 0x4 - core index']
  #allocation1 [shape = 'u32[144,128]{1,0:T(1,128)}', space=vmem, size = 0x12000, scoped, tag = 'internal scratch']
  %s0 = inlined_call_operand.vmem [shape: s32[16,1], index: 0, kind: input, shape index: {}]
  %s1 = inlined_call_operand.vmem [shape: f32[16,1], index: 1, kind: input, shape index: {}]
  %s2 = inlined_call_operand.hbm [shape: bf16[128,128], index: 2, kind: input, shape index: {}]
  %s3 = inlined_call_operand.hbm [shape: bf16[128,128], index: 3, kind: input, shape index: {}]
  %s4 = inlined_call_operand.vmem [shape: f32[1,128], index: 4, kind: input, shape index: {}]
  %s5 = inlined_call_operand.hbm [shape: f32[2,128], index: 5, kind: output, shape index: {}]
  %s6 = sld [smem:[#allocation0]]
  $region38: #{tpu_custom_call.1} parent=0
    _
  %s8 = ssub.s32 1, %s6
  %s9 = scalar_select 0, %s8, %s6
  $region1: #{tpu_custom_call.1} parent=0
    #allocation2 [shape = 'u8[32768]{0}', space=vmem, size = 0x8000, scoped, tag = 'input window, operand 2, single buffered']
    #allocation3 [shape = 's32[1]{0}', space=sflag, size = 0x4, scoped, tag = 'scoped memory for tpu_custom_call.1']
    #allocation4 [shape = 's32[1]{0}', space=sflag, size = 0x4, scoped, tag = 'scoped memory for tpu_custom_call.1']
    #allocation5 [shape = 'u8[32768]{0}', space=vmem, size = 0x8000, scoped, tag = 'input window, operand 3, single buffered']
    #allocation6 [shape = 's32[1]{0}', space=sflag, size = 0x4, scoped, tag = 'scoped memory for tpu_custom_call.1']
    #allocation7 [shape = 'u8[1024]{0}', space=vmem, size = 0x400, scoped, tag = 'output window, operand 0, single buffered']
    %10 = vsyncpa [#allocation3], 0
    %11 = vsyncpa [#allocation6], 0
    %12 = vsyncpa [#allocation4], 0
    // Predicated region
    $region2: #{tpu_custom_call.1} parent=1 // pred_check
      _
    $region3: #{tpu_custom_call.1} parent=1 // pred_check_branch
      %14 = sbr.rel (0) target = $region5
    $region4: #{tpu_custom_call.1} parent=1 // pred_region
      _
    $region5: #{tpu_custom_call.1} parent=1 // pred_fallthru
      _
    // Predicated region
    $region6: #{tpu_custom_call.1} parent=1 // pred_check
      _
    $region7: #{tpu_custom_call.1} parent=1 // pred_check_branch
      %16 = sbr.rel (0) target = $region9
    $region8: #{tpu_custom_call.1} parent=1 // pred_region
      _
    $region9: #{tpu_custom_call.1} parent=1 // pred_fallthru
      _
    // Predicated region
    $region10: #{tpu_custom_call.1} parent=1 // pred_check
      _
    $region11: #{tpu_custom_call.1} parent=1 // pred_check_branch
      %18 = sbr.rel (0) target = $region13
    $region12: #{tpu_custom_call.1} parent=1 // pred_region
      %s20 = ssub.s32 1024, 1024
      %21 = vsyncadd [#allocation3], %s20
      %s22 = sshll.u32 [#allocation2], 4
      %s23 = int_to_ptr.vmem [resolvable:$true] %s22
      %28 = dma.hbm_to_vmem [thread:$0]  %s2, 1024, %s23, [#allocation3], 64, 64, 4
    $region13: #{tpu_custom_call.1} parent=1 // pred_fallthru
      _
    // Predicated region
    $region14: #{tpu_custom_call.1} parent=1 // pred_check
      _
    $region15: #{tpu_custom_call.1} parent=1 // pred_check_branch
      %30 = sbr.rel (0) target = $region17
    $region16: #{tpu_custom_call.1} parent=1 // pred_region
      %s32 = ssub.s32 1024, 1024
      %33 = vsyncadd [#allocation6], %s32
      %s34 = sshll.u32 [#allocation5], 4
      %s35 = int_to_ptr.vmem [resolvable:$true] %s34
      %40 = dma.hbm_to_vmem [thread:$0]  %s3, 1024, %s35, [#allocation6], 64, 64, 4
    $region17: #{tpu_custom_call.1} parent=1 // pred_fallthru
      _
    // Predicated region
    $region18: #{tpu_custom_call.1} parent=1 // pred_check
      _
    $region19: #{tpu_custom_call.1} parent=1 // pred_check_branch
      %42 = sbr.rel (0) target = $region21
    $region20: #{tpu_custom_call.1} parent=1 // pred_region
      _
    $region21: #{tpu_custom_call.1} parent=1 // pred_fallthru
      _
    // Predicated region
    $region22: #{tpu_custom_call.1} parent=1 // pred_check
      _
    $region23: #{tpu_custom_call.1} parent=1 // pred_check_branch
      %44 = sbr.rel (0) target = $region25
    $region24: #{tpu_custom_call.1} parent=1 // pred_region
      %45 = dma.done [#allocation3], 1024
    $region25: #{tpu_custom_call.1} parent=1 // pred_fallthru
      _
    // Predicated region
    $region26: #{tpu_custom_call.1} parent=1 // pred_check
      _
    $region27: #{tpu_custom_call.1} parent=1 // pred_check_branch
      %47 = sbr.rel (0) target = $region29
    $region28: #{tpu_custom_call.1} parent=1 // pred_region
      %48 = dma.done [#allocation6], 1024
    $region29: #{tpu_custom_call.1} parent=1 // pred_fallthru
      _
    %v50 = vld [vmem:[%s0] sm:$0xff]
    %v51 = vld [vmem:[%s0 + $0x8] sm:$0xff]
    %v52 = vlaneseq
    %v53 = vand.u32 %v52, 127
    %54 = vset.pattern.permute.xlu0 0
    %55 = vperm.xlu0 %54, %v50
    %v56 = vpop.permute.xlu0 %55
    %57 = vset.pattern.permute.xlu0 0
    %58 = vperm.xlu0 %57, %v51
    %v59 = vpop.permute.xlu0 %58
    %vm60 = vcmp.eq.s32.totalorder %v53, %v56
    %vm61 = vcmp.eq.s32.totalorder %v53, %v59
    %v62 = vsel %vm60, 1, 0
    %v63 = vsel %vm61, 1, 0
    %v64 = vcvt.s32.f32 %v62
    %v65 = vcvt.s32.f32 %v63
    %v66 = vpack.c.bf16 %v65, %v64
    %v67 = vld [vmem:[#allocation2] sm:$0xf]
    %v68 = vld [vmem:[#allocation2 + $0x4] sm:$0xf]
    %v69 = vld [vmem:[#allocation2 + $0x8] sm:$0xf]
    %v70 = vld [vmem:[#allocation2 + $0xc] sm:$0xf]
    %v71 = vld [vmem:[#allocation2 + $0x10] sm:$0xf]
    %v72 = vld [vmem:[#allocation2 + $0x14] sm:$0xf]
    %v73 = vld [vmem:[#allocation2 + $0x18] sm:$0xf]
    %v74 = vld [vmem:[#allocation2 + $0x1c] sm:$0xf]
    %v75 = vld [vmem:[#allocation2 + $0x20] sm:$0xf]
    %v76 = vld [vmem:[#allocation2 + $0x24] sm:$0xf]
    %v77 = vld [vmem:[#allocation2 + $0x28] sm:$0xf]
    %v78 = vld [vmem:[#allocation2 + $0x2c] sm:$0xf]
    %v79 = vld [vmem:[#allocation2 + $0x30] sm:$0xf]
    %v80 = vld [vmem:[#allocation2 + $0x34] sm:$0xf]
    %v81 = vld [vmem:[#allocation2 + $0x38] sm:$0xf]
    %v82 = vld [vmem:[#allocation2 + $0x3c] sm:$0xf]
    %v99 = vunpack.c.l.b16 %v67
    %v100 = vunpack.c.l.b16 %v68
    %v101 = vunpack.c.l.b16 %v69
    %v102 = vunpack.c.l.b16 %v70
    %v103 = vunpack.c.l.b16 %v71
    %v104 = vunpack.c.l.b16 %v72
    %v105 = vunpack.c.l.b16 %v73
    %v106 = vunpack.c.l.b16 %v74
    %v107 = vunpack.c.l.b16 %v75
    %v108 = vunpack.c.l.b16 %v76
    %v109 = vunpack.c.l.b16 %v77
    %v110 = vunpack.c.l.b16 %v78
    %v111 = vunpack.c.l.b16 %v79
    %v112 = vunpack.c.l.b16 %v80
    %v113 = vunpack.c.l.b16 %v81
    %v114 = vunpack.c.l.b16 %v82
    %v115 = vpack.c.b16 %v100, %v99
    %v116 = vpack.c.b16 %v102, %v101
    %v117 = vpack.c.b16 %v104, %v103
    %v118 = vpack.c.b16 %v106, %v105
    %v119 = vpack.c.b16 %v108, %v107
    %v120 = vpack.c.b16 %v110, %v109
    %v121 = vpack.c.b16 %v112, %v111
    %v122 = vpack.c.b16 %v114, %v113
    %131 = vmatprep.subr.bf16.mxu0 0
    %132 = vmatpush1.bf16.msra.mxu0 %v115
    %133 = vmatprep.subr.bf16.mxu0 0
    %134 = vmatpush1.bf16.msra.mxu0 %v116
    %135 = vmatprep.subr.bf16.mxu0 0
    %136 = vmatpush1.bf16.msra.mxu0 %v117
    %137 = vmatprep.subr.bf16.mxu0 0
    %138 = vmatpush1.bf16.msra.mxu0 %v118
    %139 = vmatprep.subr.bf16.mxu0 0
    %140 = vmatpush1.bf16.msra.mxu0 %v119
    %141 = vmatprep.subr.bf16.mxu0 0
    %142 = vmatpush1.bf16.msra.mxu0 %v120
    %143 = vmatprep.subr.bf16.mxu0 0
    %144 = vmatpush1.bf16.msra.mxu0 %v121
    %145 = vmatprep.subr.bf16.mxu0 0
    %146 = vmatpush1.bf16.msra.mxu0 %v122
    %147 = vmatprep.subr.bf16.mxu0 0
    %148 = vmatpush1.bf16.msra.mxu0 0
    %149 = vmatprep.subr.bf16.mxu0 0
    %150 = vmatpush1.bf16.msra.mxu0 0
    %151 = vmatprep.subr.bf16.mxu0 0
    %152 = vmatpush1.bf16.msra.mxu0 0
    %153 = vmatprep.subr.bf16.mxu0 0
    %154 = vmatpush1.bf16.msra.mxu0 0
    %155 = vmatprep.subr.bf16.mxu0 0
    %156 = vmatpush1.bf16.msra.mxu0 0
    %157 = vmatprep.subr.bf16.mxu0 0
    %158 = vmatpush1.bf16.msra.mxu0 0
    %159 = vmatprep.subr.bf16.mxu0 0
    %160 = vmatpush1.bf16.msra.mxu0 0
    %161 = vmatprep.subr.bf16.mxu0 0
    %162 = vmatpush1.bf16.msra.mxu0 0
    %163 = vmatprep.mubr.bf16.mxu0 0
    %164 = vmatmul.mubr.bf16.gmra.mrb[0].mxu0 %v66
    %v165 = vpop.f32.mrb[0].mxu0
    %v166 = vadd.f32 0.0, %v165
    %v167 = vpop.f32.mrb[0].mxu0
    %v168 = vpop.f32.mrb[0].mxu0
    %v169 = vadd.f32 0.0, %v168
    %v170 = vpop.f32.mrb[0].mxu0
    %171 = vdwg.mxu0
    %v172 = vpack.c.bf16 %v169, %v166
    %v173 = vld [vmem:[#allocation5] sm:$0xf]
    %v174 = vld [vmem:[#allocation5 + $0x4] sm:$0xf]
    %v175 = vld [vmem:[#allocation5 + $0x8] sm:$0xf]
    %v176 = vld [vmem:[#allocation5 + $0xc] sm:$0xf]
    %v177 = vld [vmem:[#allocation5 + $0x10] sm:$0xf]
    %v178 = vld [vmem:[#allocation5 + $0x14] sm:$0xf]
    %v179 = vld [vmem:[#allocation5 + $0x18] sm:$0xf]
    %v180 = vld [vmem:[#allocation5 + $0x1c] sm:$0xf]
    %v181 = vld [vmem:[#allocation5 + $0x20] sm:$0xf]
    %v182 = vld [vmem:[#allocation5 + $0x24] sm:$0xf]
    %v183 = vld [vmem:[#allocation5 + $0x28] sm:$0xf]
    %v184 = vld [vmem:[#allocation5 + $0x2c] sm:$0xf]
    %v185 = vld [vmem:[#allocation5 + $0x30] sm:$0xf]
    %v186 = vld [vmem:[#allocation5 + $0x34] sm:$0xf]
    %v187 = vld [vmem:[#allocation5 + $0x38] sm:$0xf]
    %v188 = vld [vmem:[#allocation5 + $0x3c] sm:$0xf]
    %v189 = vld [vmem:[%s4] sm:$0x1]
    %v191 = vlaneseq
    %v192 = vshrl.u32 %v191, 7
    %v193 = vsub.s32 0, %v192
    %v194 = vrot.slane %v189, %v193
    %v212 = vunpack.c.l.b16 %v173
    %v213 = vunpack.c.l.b16 %v174
    %v214 = vunpack.c.l.b16 %v175
    %v215 = vunpack.c.l.b16 %v176
    %v216 = vunpack.c.l.b16 %v177
    %v217 = vunpack.c.l.b16 %v178
    %v218 = vunpack.c.l.b16 %v179
    %v219 = vunpack.c.l.b16 %v180
    %v220 = vunpack.c.l.b16 %v181
    %v221 = vunpack.c.l.b16 %v182
    %v222 = vunpack.c.l.b16 %v183
    %v223 = vunpack.c.l.b16 %v184
    %v224 = vunpack.c.l.b16 %v185
    %v225 = vunpack.c.l.b16 %v186
    %v226 = vunpack.c.l.b16 %v187
    %v227 = vunpack.c.l.b16 %v188
    %v228 = vpack.c.b16 %v213, %v212
    %v229 = vpack.c.b16 %v215, %v214
    %v230 = vpack.c.b16 %v217, %v216
    %v231 = vpack.c.b16 %v219, %v218
    %v232 = vpack.c.b16 %v221, %v220
    %v233 = vpack.c.b16 %v223, %v222
    %v234 = vpack.c.b16 %v225, %v224
    %v235 = vpack.c.b16 %v227, %v226
    %244 = vmatprep.subr.bf16.mxu0 0
    %245 = vmatpush1.bf16.msra.mxu0 %v228
    %246 = vmatprep.subr.bf16.mxu0 0
    %247 = vmatpush1.bf16.msra.mxu0 %v229
    %248 = vmatprep.subr.bf16.mxu0 0
    %249 = vmatpush1.bf16.msra.mxu0 %v230
    %250 = vmatprep.subr.bf16.mxu0 0
    %251 = vmatpush1.bf16.msra.mxu0 %v231
    %252 = vmatprep.subr.bf16.mxu0 0
    %253 = vmatpush1.bf16.msra.mxu0 %v232
    %254 = vmatprep.subr.bf16.mxu0 0
    %255 = vmatpush1.bf16.msra.mxu0 %v233
    %256 = vmatprep.subr.bf16.mxu0 0
    %257 = vmatpush1.bf16.msra.mxu0 %v234
    %258 = vmatprep.subr.bf16.mxu0 0
    %259 = vmatpush1.bf16.msra.mxu0 %v235
    %260 = vmatprep.subr.bf16.mxu0 0
    %261 = vmatpush1.bf16.msra.mxu0 0
    %262 = vmatprep.subr.bf16.mxu0 0
    %263 = vmatpush1.bf16.msra.mxu0 0
    %264 = vmatprep.subr.bf16.mxu0 0
    %265 = vmatpush1.bf16.msra.mxu0 0
    %266 = vmatprep.subr.bf16.mxu0 0
    %267 = vmatpush1.bf16.msra.mxu0 0
    %268 = vmatprep.subr.bf16.mxu0 0
    %269 = vmatpush1.bf16.msra.mxu0 0
    %270 = vmatprep.subr.bf16.mxu0 0
    %271 = vmatpush1.bf16.msra.mxu0 0
    %272 = vmatprep.subr.bf16.mxu0 0
    %273 = vmatpush1.bf16.msra.mxu0 0
    %274 = vmatprep.subr.bf16.mxu0 0
    %275 = vmatpush1.bf16.msra.mxu0 0
    %276 = vmatprep.mubr.bf16.mxu0 0
    %277 = vmatmul.mubr.bf16.gmra.mrb[0].mxu0 %v172
    %v278 = vpop.f32.mrb[0].mxu0
    %v279 = vadd.f32 %v194, %v278
    %v280 = vpop.f32.mrb[0].mxu0
    %v281 = vpop.f32.mrb[0].mxu0
    %v282 = vadd.f32 %v194, %v281
    %v283 = vpop.f32.mrb[0].mxu0
    %284 = vdwg.mxu0
    %v285 = vtanh.pop %v279
    %v286 = vtanh.pop %v282
    %v287 = vld [vmem:[%s1] sm:$0xff]
    %v288 = vld [vmem:[%s1 + $0x8] sm:$0xff]
    %290 = vset.pattern.permute.xlu0 0
    %291 = vperm.xlu0 %290, %v287
    %v292 = vpop.permute.xlu0 %291
    %295 = vset.pattern.permute.xlu0 0
    %296 = vperm.xlu0 %295, %v288
    %v297 = vpop.permute.xlu0 %296
    %v299 = vmul.f32 %v285, %v292
    %v300 = vmul.f32 %v286, %v297
    %v301 = vrot.slane %v299, 4
    %v302 = vadd.f32 %v299, %v301
    %v303 = vrot.slane %v302, 2
    %v304 = vadd.f32 %v302, %v303
    %v305 = vrot.slane %v304, 1
    %v306 = vadd.f32 %v304, %v305
    %v307 = vrot.slane %v300, 4
    %v308 = vadd.f32 %v300, %v307
    %v309 = vrot.slane %v308, 2
    %v310 = vadd.f32 %v308, %v309
    %v311 = vrot.slane %v310, 1
    %v312 = vadd.f32 %v310, %v311
    %v313 = vmul.f32 %v306, %v306
    %v314 = vmul.f32 %v312, %v312
    %vm317 = vcmask 1041409
    %v318 = vsel %vm317, %v314, %v313
    %vm320 = vcmask 1041408
    %v321 = vsel %vm320, %v318, 0.0
    %322 = vadd.xlane.f32.xlu0 %v321
    %v323 = vpop.xlane.xlu0 %322
    %v324 = vmax.f32 %v323, 1e-24
    %v325 = vrsqrt.pop %v324
    %v327 = vrot.slane %v325, 1
    %v330 = vmul.f32 %v306, %v325
    %v331 = vmul.f32 %v312, %v327
    %v334 = vrot.slane %v331, 7
    %v335 = vsel %vm317, %v334, %v330
    %337 = vst [vmem:[#allocation7] sm:$0x3] %v335
    // Predicated region
    $region30: #{tpu_custom_call.1} parent=1 // pred_check
      _
    $region31: #{tpu_custom_call.1} parent=1 // pred_check_branch
      %339 = sbr.rel (0) target = $region33
    $region32: #{tpu_custom_call.1} parent=1 // pred_region
      %s341 = ssub.s32 32, 32
      %342 = vsyncadd [#allocation4], %s341
      %s344 = sshll.u32 [#allocation7], 4
      %s345 = int_to_ptr.vmem [resolvable:$true] %s344
      %347 = dma.vmem_to_hbm [thread:$0]  %s345, 32, %s5, [#allocation4]
    $region33: #{tpu_custom_call.1} parent=1 // pred_fallthru
      _
    // Predicated region
    $region34: #{tpu_custom_call.1} parent=1 // pred_check
      _
    $region35: #{tpu_custom_call.1} parent=1 // pred_check_branch
      %349 = sbr.rel (0) target = $region37
    $region36: #{tpu_custom_call.1} parent=1 // pred_region
      %350 = dma.done [#allocation4], 32
    $region37: #{tpu_custom_call.1} parent=1 // pred_fallthru
      _
    %351 = vsyncpa [#allocation3], 1
    %352 = vsyncpa [#allocation6], 1
    %353 = vsyncpa [#allocation4], 1

</llo_original>
